<compile_context>
chip_gen: v7x
topology: tpu7x:2x2x1
jax: 0.10.0
libtpu: 0.0.40
codegen_flags: <defaults>
</compile_context>

<pallas_src>
import math

import jax
import jax.numpy as jnp
import numpy as np
from jax import lax
from jax.experimental import pallas as pl
from jax.experimental.pallas import tpu as pltpu

# ---------------------------- problem sizes (small, synthetic) ----------------------------
B, S, H, V = 2, 16, 128, 512      # batch, seq, hidden, vocab (lane-aligned: H, V % 128 == 0)
EPS = 1e-12
_INV_SQRT2 = 1.0 / math.sqrt(2.0)


# ---------------------------------------- kernel ------------------------------------------
def _mlm_head_kernel(x_ref, wt_ref, p_ref, dw_ref, db_ref, out_ref, h_ref):
    """Shapes per grid step (grid = (row_tiles, vocab_tiles)):
      x_ref : (TM, H)  f32    row tile of flattened sequence_output (cast to bf16 in-kernel)
      wt_ref: (H, H)   bf16   transform dense weight, already [in, out]
      p_ref : (3, H)   f32    packed [dense bias, LN gamma, LN beta]
      dw_ref: (H, TN)  bf16   decoder (tied embedding) weight tile, already [in, out]
      db_ref: (1, TN)  f32    decoder bias tile
      out_ref:(TM, TN) f32    prediction-score tile
      h_ref : (TM, H)  f32    VMEM scratch: transformed hidden states (reused across vocab tiles)

    INVARIANT: h_ref is written only when program_id(1) == 0 and read on every vocab step of
    the same row tile.  The vocab axis must therefore stay the innermost, sequentially
    iterated ("arbitrary") grid axis.
    """
    # Transform (dense -> gelu -> LayerNorm) once per row tile, at the first vocab tile.
    @pl.when(pl.program_id(1) == 0)
    def _():
        p = p_ref[...]                                           # (3, H) f32
        x = x_ref[...].astype(jnp.bfloat16)                      # free VPU cast under the MXU
        h = jnp.dot(x, wt_ref[...],
                    preferred_element_type=jnp.float32) + p[0:1]
        # exact (erf-based) gelu, as in the PyTorch module (EUP slot -> essentially free)
        h = 0.5 * h * (1.0 + lax.erf(h * _INV_SQRT2))
        # TF-style LayerNorm (epsilon inside the square root)
        u = jnp.mean(h, axis=-1, keepdims=True)
        s = jnp.mean((h - u) ** 2, axis=-1, keepdims=True)
        h = (h - u) * lax.rsqrt(s + EPS)
        h_ref[...] = p[1:2] * h + p[2:3]                         # keep f32 for logit accuracy

    # Decoder: scores = h @ W_emb.T + bias (weight already transposed host-side).
    out_ref[...] = (jnp.dot(h_ref[...].astype(jnp.bfloat16), dw_ref[...],
                            preferred_element_type=jnp.float32)
                    + db_ref[...]).astype(out_ref.dtype)


# ------------------------------------ tiling helpers ---------------------------------------
def _row_tile(M):
    """Largest row tile <= 256 that divides M (multiple of 8 for f32 sublanes)."""
    if M <= 256:
        return M
    for tm in (256, 128, 64, 32, 16, 8):
        if M % tm == 0:
            return tm
    return M


def _vocab_tile(Vv):
    """Full vocab when small, else the largest lane-dense tile <= 1024 that divides V."""
    if Vv <= 1024:
        return Vv
    for tn in (1024, 512, 256, 128):
        if Vv % tn == 0:
            return tn
    return Vv


def _vmem_budget_bytes(tm, h, tn):
    """Double-buffered tile footprint + scratch, with 50% headroom (kept << 48 MiB)."""
    dbuf = 2
    need = (dbuf * tm * h * 4        # x tile (f32)
            + dbuf * h * h * 2       # transform weight (bf16, resident)
            + dbuf * 3 * h * 4       # packed bias/gamma/beta
            + dbuf * h * tn * 2      # decoder weight tile (bf16)
            + dbuf * tn * 4          # decoder bias tile
            + dbuf * tm * tn * 4     # output tile (f32)
            + tm * h * 4)            # h scratch (f32)
    return min(max(int(need * 1.5), 8 << 20), 48 << 20)


# ------------------------------------ param preparation ------------------------------------
def prepare_mlm_head_params(params):
    """One-time layout plumbing (do this at parameter-load time, NOT per forward call):
    pre-transpose weights to [in, out], cast matmul operands to bf16, pack tiny per-feature
    params into one array."""
    H_ = params["dense_w"].shape[0]
    V_ = params["emb_w"].shape[0]
    return {
        "wt": jnp.transpose(params["dense_w"]).astype(jnp.bfloat16),     # (H, H)  [in, out]
        "dw": jnp.transpose(params["emb_w"]).astype(jnp.bfloat16),       # (H, V)  [in, out]
        "packed": jnp.stack([params["dense_b"], params["ln_g"], params["ln_b"]],
                            axis=0).astype(jnp.float32),                 # (3, H)
        "db": params["dec_b"].reshape(1, V_).astype(jnp.float32),        # (1, V)
        "H": H_,
        "V": V_,
    }


# ---------------------------------------- wrapper -----------------------------------------
def bert_only_mlm_head(sequence_output, prepared):
    """sequence_output: (B, S, H) f32.  prepared: output of prepare_mlm_head_params().
       Returns prediction scores (B, S, V) f32."""
    B_, S_, H_ = sequence_output.shape
    V_ = prepared["V"]
    assert prepared["H"] == H_
    M = B_ * S_

    tm = _row_tile(M)
    tn = _vocab_tile(V_)
    assert M % tm == 0 and V_ % tn == 0
    assert tm % 8 == 0 and H_ % 128 == 0 and tn % 128 == 0

    x = sequence_output.reshape(M, H_)        # f32; cast to bf16 happens inside the kernel
    grid = (M // tm, V_ // tn)

    flops = 2 * M * H_ * H_ + 2 * M * H_ * V_
    bytes_accessed = (M * H_ * 4 + H_ * H_ * 2 + 3 * H_ * 4
                      + (M // tm) * H_ * V_ * 2 + V_ * 4 + M * V_ * 4)

    out = pl.pallas_call(
        _mlm_head_kernel,
        out_shape=jax.ShapeDtypeStruct((M, V_), jnp.float32),
        grid_spec=pltpu.PrefetchScalarGridSpec(
            num_scalar_prefetch=0,
            grid=grid,
            in_specs=[
                pl.BlockSpec((tm, H_), lambda i, j: (i, 0)),    # activations row tile (f32)
                pl.BlockSpec((H_, H_), lambda i, j: (0, 0)),    # transform dense W (resident)
                pl.BlockSpec((3, H_), lambda i, j: (0, 0)),     # packed bias/gamma/beta
                pl.BlockSpec((H_, tn), lambda i, j: (0, j)),    # decoder W vocab tile
                pl.BlockSpec((1, tn), lambda i, j: (0, j)),     # decoder bias vocab tile
            ],
            out_specs=pl.BlockSpec((tm, tn), lambda i, j: (i, j)),
            scratch_shapes=[pltpu.VMEM((tm, H_), jnp.float32)],
        ),
        compiler_params=pltpu.CompilerParams(
            dimension_semantics=("parallel", "arbitrary"),
            vmem_limit_bytes=_vmem_budget_bytes(tm, H_, tn)),
        cost_estimate=pl.CostEstimate(flops=flops, transcendentals=M * H_,
                                      bytes_accessed=bytes_accessed),
    )(x, prepared["wt"], prepared["packed"], prepared["dw"], prepared["db"])
    return out.reshape(B_, S_, V_)


# ------------------------------ pure-JAX reference (f32) -----------------------------------
def reference(sequence_output, params):
    hi = lax.Precision.HIGHEST
    h = jnp.einsum("bsh,oh->bso", sequence_output, params["dense_w"],
                   precision=hi) + params["dense_b"]
    h = 0.5 * h * (1.0 + lax.erf(h / math.sqrt(2.0)))
    u = jnp.mean(h, axis=-1, keepdims=True)
    s = jnp.mean((h - u) ** 2, axis=-1, keepdims=True)
    h = params["ln_g"] * ((h - u) / jnp.sqrt(s + EPS)) + params["ln_b"]
    scores = jnp.einsum("bsh,vh->bsv", h, params["emb_w"], precision=hi) + params["dec_b"]
    return scores


# ------------------------------------------ main -------------------------------------------
if __name__ == "__main__":
    key = jax.random.PRNGKey(0)
    keys = jax.random.split(key, 6)

    sequence_output = jax.random.normal(keys[0], (B, S, H), jnp.float32)

    # Synthetic parameters matching the nn.Module shapes / init conventions.
    params = {
        "dense_w": 0.02 * jax.random.normal(keys[1], (H, H), jnp.float32),   # [out, in]
        "dense_b": jax.random.uniform(keys[2], (H,), jnp.float32, -0.1, 0.1),
        "ln_g": jnp.ones((H,), jnp.float32),                                 # gamma = 1
        "ln_b": jnp.zeros((H,), jnp.float32),                                # beta  = 0
        "emb_w": 0.02 * jax.random.normal(keys[3], (V, H), jnp.float32),     # tied embedding
        "dec_b": jnp.zeros((V,), jnp.float32),                               # decoder bias
    }

    # One-time weight layout/casting (hoisted out of the per-call forward path).
    prepared = jax.tree_util.tree_map(
        lambda a: jax.block_until_ready(a) if isinstance(a, jax.Array) else a,
        prepare_mlm_head_params(params))

    scores = bert_only_mlm_head(sequence_output, prepared)
    scores = jax.block_until_ready(scores)

    ref = reference(sequence_output, params)
    # bf16 matmul operands (f32 accumulation, f32 LayerNorm/h) vs. a true-f32 reference.
    np.testing.assert_allclose(np.asarray(scores), np.asarray(ref), rtol=2e-2, atol=2e-2)

    print("KERNEL_OK")
</pallas_src>

<mosaic_0001>
module attributes {stable_mosaic.version = 11 : i64} {
  func.func @_mlm_head_kernel(%arg0: i32, %arg1: i32, %arg2: memref<32x128xf32, #tpu.memory_space<vmem>>, %arg3: memref<128x128xbf16, #tpu.memory_space<vmem>>, %arg4: memref<3x128xf32, #tpu.memory_space<vmem>>, %arg5: memref<128x512xbf16, #tpu.memory_space<vmem>>, %arg6: memref<1x512xf32, #tpu.memory_space<vmem>>, %arg7: memref<32x512xf32, #tpu.memory_space<vmem>>, %arg8: memref<32x128xf32, #tpu.memory_space<vmem>>) attributes {dimension_semantics = [#tpu.dimension_semantics<parallel>, #tpu.dimension_semantics<arbitrary>], iteration_bounds = array<i64: 1, 1>, scalar_prefetch = 0 : i64, scratch_operands = 1 : i64, tpu.core_type = #tpu.core_type<tc>, window_params = [{transform_indices = @transform_0, window_bounds = array<i64: 32, 128>}, {pipeline_mode = #tpu.pipeline_mode<synchronous>, transform_indices = @transform_1, window_bounds = array<i64: 128, 128>}, {pipeline_mode = #tpu.pipeline_mode<synchronous>, transform_indices = @transform_2, window_bounds = array<i64: 3, 128>}, {transform_indices = @transform_3, window_bounds = array<i64: 128, 512>}, {transform_indices = @transform_4, window_bounds = array<i64: 1, 512>}, {transform_indices = @transform_5, window_bounds = array<i64: 32, 512>}]} {
    %c0_i32 = arith.constant 0 : i32
    %0 = arith.cmpi eq, %arg1, %c0_i32 : i32
    %1 = arith.extui %0 : i1 to i32
    %c0_i32_0 = arith.constant 0 : i32
    %2 = arith.cmpi ne, %1, %c0_i32_0 : i32
    scf.if %2 {
      %c0_8 = arith.constant 0 : index
      %c0_9 = arith.constant 0 : index
      %11 = vector.load %arg4[%c0_8, %c0_9] : memref<3x128xf32, #tpu.memory_space<vmem>>, vector<3x128xf32>
      %c0_10 = arith.constant 0 : index
      %c0_11 = arith.constant 0 : index
      %12 = vector.load %arg2[%c0_10, %c0_11] : memref<32x128xf32, #tpu.memory_space<vmem>>, vector<32x128xf32>
      %13 = arith.truncf %12 : vector<32x128xf32> to vector<32x128xbf16>
      %c0_12 = arith.constant 0 : index
      %c0_13 = arith.constant 0 : index
      %14 = vector.load %arg3[%c0_12, %c0_13] : memref<128x128xbf16, #tpu.memory_space<vmem>>, vector<128x128xbf16>
      %cst_14 = arith.constant dense<0.000000e+00> : vector<32x128xf32>
      %15 = tpu.matmul %13, %14, %cst_14 {dimension_numbers = #tpu.dot_dimension_numbers<[1], [0], [0], [1], [0, 0, 1, 1], [], []>} : vector<32x128xbf16>, vector<128x128xbf16>, vector<32x128xf32> -> vector<32x128xf32>
      %16 = vector.extract_strided_slice %11 {offsets = [0, 0], sizes = [1, 128], strides = [1, 1]} : vector<3x128xf32> to vector<1x128xf32>
      %17 = vector.broadcast %16 : vector<1x128xf32> to vector<32x128xf32>
      %18 = arith.addf %15, %17 : vector<32x128xf32>
      %cst_15 = arith.constant 5.000000e-01 : f32
      %19 = vector.broadcast %cst_15 : f32 to vector<32x128xf32>
      %20 = arith.mulf %19, %18 : vector<32x128xf32>
      %cst_16 = arith.constant 0.707106769 : f32
      %21 = vector.broadcast %cst_16 : f32 to vector<32x128xf32>
      %22 = arith.mulf %18, %21 : vector<32x128xf32>
      %23 = math.erf %22 : vector<32x128xf32>
      %cst_17 = arith.constant 1.000000e+00 : f32
      %24 = vector.broadcast %cst_17 : f32 to vector<32x128xf32>
      %25 = arith.addf %24, %23 : vector<32x128xf32>
      %26 = arith.mulf %20, %25 : vector<32x128xf32>
      %cst_18 = arith.constant dense<0.000000e+00> : vector<32xf32>
      %27 = vector.multi_reduction <add>, %26, %cst_18 [1] : vector<32x128xf32> to vector<32xf32>
      %28 = vector.shape_cast %27 : vector<32xf32> to vector<32x1xf32>
      %cst_19 = arith.constant 1.280000e+02 : f32
      %29 = vector.broadcast %cst_19 : f32 to vector<32x1xf32>
      %30 = arith.divf %28, %29 : vector<32x1xf32>
      %31 = vector.broadcast %30 : vector<32x1xf32> to vector<32x128xf32>
      %32 = arith.subf %26, %31 : vector<32x128xf32>
      %33 = arith.mulf %32, %32 : vector<32x128xf32>
      %cst_20 = arith.constant dense<0.000000e+00> : vector<32xf32>
      %34 = vector.multi_reduction <add>, %33, %cst_20 [1] : vector<32x128xf32> to vector<32xf32>
      %35 = vector.shape_cast %34 : vector<32xf32> to vector<32x1xf32>
      %cst_21 = arith.constant 1.280000e+02 : f32
      %36 = vector.broadcast %cst_21 : f32 to vector<32x1xf32>
      %37 = arith.divf %35, %36 : vector<32x1xf32>
      %38 = vector.broadcast %30 : vector<32x1xf32> to vector<32x128xf32>
      %39 = arith.subf %26, %38 : vector<32x128xf32>
      %cst_22 = arith.constant 9.99999996E-13 : f32
      %40 = vector.broadcast %cst_22 : f32 to vector<32x1xf32>
      %41 = arith.addf %37, %40 : vector<32x1xf32>
      %42 = math.rsqrt %41 : vector<32x1xf32>
      %43 = vector.broadcast %42 : vector<32x1xf32> to vector<32x128xf32>
      %44 = arith.mulf %39, %43 : vector<32x128xf32>
      %45 = vector.extract_strided_slice %11 {offsets = [1, 0], sizes = [1, 128], strides = [1, 1]} : vector<3x128xf32> to vector<1x128xf32>
      %46 = vector.broadcast %45 : vector<1x128xf32> to vector<32x128xf32>
      %47 = arith.mulf %46, %44 : vector<32x128xf32>
      %48 = vector.extract_strided_slice %11 {offsets = [2, 0], sizes = [1, 128], strides = [1, 1]} : vector<3x128xf32> to vector<1x128xf32>
      %49 = vector.broadcast %48 : vector<1x128xf32> to vector<32x128xf32>
      %50 = arith.addf %47, %49 : vector<32x128xf32>
      %c0_23 = arith.constant 0 : index
      %c0_24 = arith.constant 0 : index
      %51 = vector.load %arg8[%c0_23, %c0_24] : memref<32x128xf32, #tpu.memory_space<vmem>>, vector<32x128xf32>
      tpu.vector_store %arg8[%c0_23, %c0_24], %50 {strides = array<i32>} : memref<32x128xf32, #tpu.memory_space<vmem>>, vector<32x128xf32>,
    } else {
    }
    %c0 = arith.constant 0 : index
    %c0_1 = arith.constant 0 : index
    %3 = vector.load %arg8[%c0, %c0_1] : memref<32x128xf32, #tpu.memory_space<vmem>>, vector<32x128xf32>
    %4 = arith.truncf %3 : vector<32x128xf32> to vector<32x128xbf16>
    %c0_2 = arith.constant 0 : index
    %c0_3 = arith.constant 0 : index
    %5 = vector.load %arg5[%c0_2, %c0_3] : memref<128x512xbf16, #tpu.memory_space<vmem>>, vector<128x512xbf16>
    %cst = arith.constant dense<0.000000e+00> : vector<32x512xf32>
    %6 = tpu.matmul %4, %5, %cst {dimension_numbers = #tpu.dot_dimension_numbers<[1], [0], [0], [1], [0, 0, 1, 1], [], []>} : vector<32x128xbf16>, vector<128x512xbf16>, vector<32x512xf32> -> vector<32x512xf32>
    %c0_4 = arith.constant 0 : index
    %c0_5 = arith.constant 0 : index
    %7 = vector.load %arg6[%c0_4, %c0_5] : memref<1x512xf32, #tpu.memory_space<vmem>>, vector<1x512xf32>
    %8 = vector.broadcast %7 : vector<1x512xf32> to vector<32x512xf32>
    %9 = arith.addf %6, %8 : vector<32x512xf32>
    %c0_6 = arith.constant 0 : index
    %c0_7 = arith.constant 0 : index
    %10 = vector.load %arg7[%c0_6, %c0_7] : memref<32x512xf32, #tpu.memory_space<vmem>>, vector<32x512xf32>
    tpu.vector_store %arg7[%c0_6, %c0_7], %9 {strides = array<i32>} : memref<32x512xf32, #tpu.memory_space<vmem>>, vector<32x512xf32>,
    return
  }
  func.func @transform_0(%arg0: i32, %arg1: i32) -> (i32, i32) {
    %c0_i32 = arith.constant 0 : i32
    %c0_i32_0 = arith.constant 0 : i32
    return %arg0, %c0_i32 : i32, i32
  }
  func.func @transform_1(%arg0: i32, %arg1: i32) -> (i32, i32) {
    %c0_i32 = arith.constant 0 : i32
    %c0_i32_0 = arith.constant 0 : i32
    %c0_i32_1 = arith.constant 0 : i32
    return %c0_i32, %c0_i32_0 : i32, i32
  }
  func.func @transform_2(%arg0: i32, %arg1: i32) -> (i32, i32) {
    %c0_i32 = arith.constant 0 : i32
    %c0_i32_0 = arith.constant 0 : i32
    %c0_i32_1 = arith.constant 0 : i32
    return %c0_i32, %c0_i32_0 : i32, i32
  }
  func.func @transform_3(%arg0: i32, %arg1: i32) -> (i32, i32) {
    %c0_i32 = arith.constant 0 : i32
    %c0_i32_0 = arith.constant 0 : i32
    return %c0_i32, %arg1 : i32, i32
  }
  func.func @transform_4(%arg0: i32, %arg1: i32) -> (i32, i32) {
    %c0_i32 = arith.constant 0 : i32
    %c0_i32_0 = arith.constant 0 : i32
    return %c0_i32, %arg1 : i32, i32
  }
  func.func @transform_5(%arg0: i32, %arg1: i32) -> (i32, i32) {
    %c0_i32 = arith.constant 0 : i32
    return %arg0, %arg1 : i32, i32
  }
}

</mosaic_0001>

<llo_original>
// kernel: tpu_custom_call.1
$region0: #{tpu_custom_call.1}
  #allocation0 [shape = 'u32[]', space=smem, size = 0x4, offset = 0x4, fixed_abs, tag = 'smem constant byte address 0x4 - core index']
  #allocation1 [shape = 'u32[144,128]{1,0:T(1,128)}', space=vmem, size = 0x12000, scoped, tag = 'internal scratch']
  #allocation2 [shape = 'f32[32,128]{1,0:T(8,128)}', space=vmem, size = 0x4000, scoped, tag = 'scratch operand']
  %s0 = inlined_call_operand.hbm [shape: f32[32,128], index: 0, kind: input, shape index: {}]
  %s1 = inlined_call_operand.hbm [shape: bf16[128,128], index: 1, kind: input, shape index: {}]
  %s2 = inlined_call_operand.vmem [shape: f32[3,128], index: 2, kind: input, shape index: {}]
  %s3 = inlined_call_operand.hbm [shape: bf16[128,512], index: 3, kind: input, shape index: {}]
  %s4 = inlined_call_operand.vmem [shape: f32[1,512], index: 4, kind: input, shape index: {}]
  %s5 = inlined_call_operand.hbm [shape: f32[32,512], index: 5, kind: output, shape index: {}]
  %s6 = sld [smem:[#allocation0]]
  $region46: #{tpu_custom_call.1} parent=0
    _
  %s8 = ssub.s32 1, %s6
  %s9 = scalar_select 0, %s8, %s6
  $region1: #{tpu_custom_call.1} parent=0
    #allocation3 [shape = 'u8[16384]{0}', space=vmem, size = 0x4000, scoped, tag = 'input window, operand 0, single buffered']
    #allocation4 [shape = 's32[1]{0}', space=sflag, size = 0x4, scoped, tag = 'scoped memory for tpu_custom_call.1']
    #allocation5 [shape = 's32[1]{0}', space=sflag, size = 0x4, scoped, tag = 'scoped memory for tpu_custom_call.1']
    #allocation6 [shape = 'u8[32768]{0}', space=vmem, size = 0x8000, scoped, tag = 'input window, operand 1, single buffered']
    #allocation7 [shape = 's32[1]{0}', space=sflag, size = 0x4, scoped, tag = 'scoped memory for tpu_custom_call.1']
    #allocation8 [shape = 'u8[131072]{0}', space=vmem, size = 0x20000, scoped, tag = 'input window, operand 3, single buffered']
    #allocation9 [shape = 'u8[65536]{0}', space=vmem, size = 0x10000, scoped, tag = 'output window, operand 0, single buffered']
    %10 = vsyncpa [#allocation4], 0
    %11 = vsyncpa [#allocation7], 0
    %12 = vsyncpa [#allocation5], 0
    // Predicated region
    $region2: #{tpu_custom_call.1} parent=1 // pred_check
      _
    $region3: #{tpu_custom_call.1} parent=1 // pred_check_branch
      %14 = sbr.rel (0) target = $region5
    $region4: #{tpu_custom_call.1} parent=1 // pred_region
      %s16 = ssub.s32 512, 512
      %17 = vsyncadd [#allocation4], %s16
      %s18 = sshll.u32 [#allocation3], 4
      %s19 = int_to_ptr.vmem [resolvable:$true] %s18
      %24 = dma.hbm_to_vmem [thread:$0]  %s0, 512, %s19, [#allocation4], 128, 128, 8
    $region5: #{tpu_custom_call.1} parent=1 // pred_fallthru
      _
    // Predicated region
    $region6: #{tpu_custom_call.1} parent=1 // pred_check
      _
    $region7: #{tpu_custom_call.1} parent=1 // pred_check_branch
      %26 = sbr.rel (0) target = $region9
    $region8: #{tpu_custom_call.1} parent=1 // pred_region
      %s28 = ssub.s32 1024, 1024
      %29 = vsyncadd [#allocation7], %s28
      %s30 = sshll.u32 [#allocation6], 4
      %s31 = int_to_ptr.vmem [resolvable:$true] %s30
      %36 = dma.hbm_to_vmem [thread:$0]  %s1, 1024, %s31, [#allocation7], 64, 64, 4
    $region9: #{tpu_custom_call.1} parent=1 // pred_fallthru
      _
    // Predicated region
    $region10: #{tpu_custom_call.1} parent=1 // pred_check
      _
    $region11: #{tpu_custom_call.1} parent=1 // pred_check_branch
      %38 = sbr.rel (0) target = $region13
    $region12: #{tpu_custom_call.1} parent=1 // pred_region
      _
    $region13: #{tpu_custom_call.1} parent=1 // pred_fallthru
      _
    // Predicated region
    $region14: #{tpu_custom_call.1} parent=1 // pred_check
      _
    $region15: #{tpu_custom_call.1} parent=1 // pred_check_branch
      %40 = sbr.rel (0) target = $region17
    $region16: #{tpu_custom_call.1} parent=1 // pred_region
      %s42 = ssub.s32 4096, 4096
      %43 = vsyncadd [#allocation7], %s42
      %s44 = sshll.u32 [#allocation8], 4
      %s45 = int_to_ptr.vmem [resolvable:$true] %s44
      %50 = dma.hbm_to_vmem [thread:$0]  %s3, 4096, %s45, [#allocation7], 256, 256, 16
    $region17: #{tpu_custom_call.1} parent=1 // pred_fallthru
      _
    // Predicated region
    $region18: #{tpu_custom_call.1} parent=1 // pred_check
      _
    $region19: #{tpu_custom_call.1} parent=1 // pred_check_branch
      %52 = sbr.rel (0) target = $region21
    $region20: #{tpu_custom_call.1} parent=1 // pred_region
      _
    $region21: #{tpu_custom_call.1} parent=1 // pred_fallthru
      _
    // Predicated region
    $region22: #{tpu_custom_call.1} parent=1 // pred_check
      _
    $region23: #{tpu_custom_call.1} parent=1 // pred_check_branch
      %54 = sbr.rel (0) target = $region25
    $region24: #{tpu_custom_call.1} parent=1 // pred_region
      %55 = dma.done [#allocation4], 512
    $region25: #{tpu_custom_call.1} parent=1 // pred_fallthru
      _
    // Predicated region
    $region26: #{tpu_custom_call.1} parent=1 // pred_check
      _
    $region27: #{tpu_custom_call.1} parent=1 // pred_check_branch
      %57 = sbr.rel (0) target = $region29
    $region28: #{tpu_custom_call.1} parent=1 // pred_region
      %58 = dma.done [#allocation7], 1024
    $region29: #{tpu_custom_call.1} parent=1 // pred_fallthru
      _
    // Predicated region
    $region30: #{tpu_custom_call.1} parent=1 // pred_check
      _
    $region31: #{tpu_custom_call.1} parent=1 // pred_check_branch
      %60 = sbr.rel (0) target = $region33
    $region32: #{tpu_custom_call.1} parent=1 // pred_region
      %61 = dma.done [#allocation7], 4096
    $region33: #{tpu_custom_call.1} parent=1 // pred_fallthru
      _
    %p63 = scmp.eq.s32.totalorder 0, 0
    // Predicated region
    $region34: #{tpu_custom_call.1} parent=1 // pred_check
      %p64 = pneg %p63
    $region35: #{tpu_custom_call.1} parent=1 // pred_check_branch
      %66 = sbr.rel (%p64) target = $region37
    $region36: #{tpu_custom_call.1} parent=1 // pred_region
      %v67 = vld [vmem:[%s2] sm:$0x7]
      %v68 = vld [vmem:[#allocation3] sm:$0xff]
      %v69 = vld [vmem:[#allocation3 + $0x8] sm:$0xff]
      %v70 = vld [vmem:[#allocation3 + $0x10] sm:$0xff]
      %v71 = vld [vmem:[#allocation3 + $0x18] sm:$0xff]
      %v72 = vpack.c.bf16 %v69, %v68
      %v73 = vpack.c.bf16 %v71, %v70
      %v74 = vld [vmem:[#allocation6] sm:$0xf]
      %v75 = vld [vmem:[#allocation6 + $0x4] sm:$0xf]
      %v76 = vld [vmem:[#allocation6 + $0x8] sm:$0xf]
      %v77 = vld [vmem:[#allocation6 + $0xc] sm:$0xf]
      %v78 = vld [vmem:[#allocation6 + $0x10] sm:$0xf]
      %v79 = vld [vmem:[#allocation6 + $0x14] sm:$0xf]
      %v80 = vld [vmem:[#allocation6 + $0x18] sm:$0xf]
      %v81 = vld [vmem:[#allocation6 + $0x1c] sm:$0xf]
      %v82 = vld [vmem:[#allocation6 + $0x20] sm:$0xf]
      %v83 = vld [vmem:[#allocation6 + $0x24] sm:$0xf]
      %v84 = vld [vmem:[#allocation6 + $0x28] sm:$0xf]
      %v85 = vld [vmem:[#allocation6 + $0x2c] sm:$0xf]
      %v86 = vld [vmem:[#allocation6 + $0x30] sm:$0xf]
      %v87 = vld [vmem:[#allocation6 + $0x34] sm:$0xf]
      %v88 = vld [vmem:[#allocation6 + $0x38] sm:$0xf]
      %v89 = vld [vmem:[#allocation6 + $0x3c] sm:$0xf]
      %v90 = vlaneseq
      %v91 = vshrl.u32 %v90, 7
      %v92 = vsub.s32 0, %v91
      %v93 = vrot.slane %v67, %v92
      %v110 = vunpack.c.l.b16 %v74
      %v111 = vunpack.c.l.b16 %v75
      %v112 = vunpack.c.l.b16 %v76
      %v113 = vunpack.c.l.b16 %v77
      %v114 = vunpack.c.l.b16 %v78
      %v115 = vunpack.c.l.b16 %v79
      %v116 = vunpack.c.l.b16 %v80
      %v117 = vunpack.c.l.b16 %v81
      %v118 = vunpack.c.l.b16 %v82
      %v119 = vunpack.c.l.b16 %v83
      %v120 = vunpack.c.l.b16 %v84
      %v121 = vunpack.c.l.b16 %v85
      %v122 = vunpack.c.l.b16 %v86
      %v123 = vunpack.c.l.b16 %v87
      %v124 = vunpack.c.l.b16 %v88
      %v125 = vunpack.c.l.b16 %v89
      %v126 = vpack.c.b16 %v111, %v110
      %v127 = vpack.c.b16 %v113, %v112
      %v128 = vpack.c.b16 %v115, %v114
      %v129 = vpack.c.b16 %v117, %v116
      %v130 = vpack.c.b16 %v119, %v118
      %v131 = vpack.c.b16 %v121, %v120
      %v132 = vpack.c.b16 %v123, %v122
      %v133 = vpack.c.b16 %v125, %v124
      %142 = vmatprep.subr.bf16.mxu0 0
      %143 = vmatpush1.bf16.msra.mxu0 %v126
      %144 = vmatprep.subr.bf16.mxu0 0
      %145 = vmatpush1.bf16.msra.mxu0 %v127
      %146 = vmatprep.subr.bf16.mxu0 0
      %147 = vmatpush1.bf16.msra.mxu0 %v128
      %148 = vmatprep.subr.bf16.mxu0 0
      %149 = vmatpush1.bf16.msra.mxu0 %v129
      %150 = vmatprep.subr.bf16.mxu0 0
      %151 = vmatpush1.bf16.msra.mxu0 %v130
      %152 = vmatprep.subr.bf16.mxu0 0
      %153 = vmatpush1.bf16.msra.mxu0 %v131
      %154 = vmatprep.subr.bf16.mxu0 0
      %155 = vmatpush1.bf16.msra.mxu0 %v132
      %156 = vmatprep.subr.bf16.mxu0 0
      %157 = vmatpush1.bf16.msra.mxu0 %v133
      %158 = vmatprep.subr.bf16.mxu0 0
      %159 = vmatpush1.bf16.msra.mxu0 0
      %160 = vmatprep.subr.bf16.mxu0 0
      %161 = vmatpush1.bf16.msra.mxu0 0
      %162 = vmatprep.subr.bf16.mxu0 0
      %163 = vmatpush1.bf16.msra.mxu0 0
      %164 = vmatprep.subr.bf16.mxu0 0
      %165 = vmatpush1.bf16.msra.mxu0 0
      %166 = vmatprep.subr.bf16.mxu0 0
      %167 = vmatpush1.bf16.msra.mxu0 0
      %168 = vmatprep.subr.bf16.mxu0 0
      %169 = vmatpush1.bf16.msra.mxu0 0
      %170 = vmatprep.subr.bf16.mxu0 0
      %171 = vmatpush1.bf16.msra.mxu0 0
      %172 = vmatprep.subr.bf16.mxu0 0
      %173 = vmatpush1.bf16.msra.mxu0 0
      %174 = vmatprep.mubr.bf16.mxu0 0
      %175 = vmatmul.mubr.bf16.gmra.mrb[0].mxu0 %v72
      %v176 = vpop.f32.mrb[0].mxu0
      %v177 = vadd.f32 %v93, %v176
      %v178 = vpop.f32.mrb[0].mxu0
      %v179 = vpop.f32.mrb[0].mxu0
      %v180 = vadd.f32 %v93, %v179
      %v181 = vpop.f32.mrb[0].mxu0
      %182 = vmatprep.mubr.bf16.mxu0 0
      %183 = vmatmul.mubr.bf16.gmra.mrb[0].mxu0 %v73
      %v184 = vpop.f32.mrb[0].mxu0
      %v185 = vadd.f32 %v93, %v184
      %v186 = vpop.f32.mrb[0].mxu0
      %v187 = vpop.f32.mrb[0].mxu0
      %v188 = vadd.f32 %v93, %v187
      %v189 = vpop.f32.mrb[0].mxu0
      %190 = vdwg.mxu0
      %v191 = vmul.f32 %v177, 0.5
      %v192 = vmul.f32 %v180, 0.5
      %v193 = vmul.f32 %v185, 0.5
      %v194 = vmul.f32 %v188, 0.5
      %v195 = vmul.f32 %v177, 0.70710677
      %v196 = vmul.f32 %v180, 0.70710677
      %v197 = vmul.f32 %v185, 0.70710677
      %v198 = vmul.f32 %v188, 0.70710677
      %v199 = verf.f32.pop %v195
      %v200 = verf.f32.pop %v196
      %v201 = verf.f32.pop %v197
      %v202 = verf.f32.pop %v198
      %v203 = vadd.f32 %v199, 1.0
      %v204 = vadd.f32 %v200, 1.0
      %v205 = vadd.f32 %v201, 1.0
      %v206 = vadd.f32 %v202, 1.0
      %v207 = vmul.f32 %v191, %v203
      %v208 = vmul.f32 %v192, %v204
      %v209 = vmul.f32 %v193, %v205
      %v210 = vmul.f32 %v194, %v206
      %211 = vadd.xlane.f32.xlu0 %v207
      %v212 = vpop.xlane.xlu0 %211
      %213 = vadd.xlane.f32.xlu0 %v208
      %v214 = vpop.xlane.xlu0 %213
      %215 = vadd.xlane.f32.xlu0 %v209
      %v216 = vpop.xlane.xlu0 %215
      %217 = vadd.xlane.f32.xlu0 %v210
      %v218 = vpop.xlane.xlu0 %217
      %v219 = vrcp.pop 128.0
      %v220 = vmul.f32 %v212, %v219
      %v221 = vmul.f32 %v214, %v219
      %v222 = vmul.f32 %v216, %v219
      %v223 = vmul.f32 %v218, %v219
      %v224 = vsub.f32 %v207, %v220
      %v225 = vsub.f32 %v208, %v221
      %v226 = vsub.f32 %v209, %v222
      %v227 = vsub.f32 %v210, %v223
      %v228 = vmul.f32 %v224, %v224
      %v229 = vmul.f32 %v225, %v225
      %v230 = vmul.f32 %v226, %v226
      %v231 = vmul.f32 %v227, %v227
      %232 = vadd.xlane.f32.xlu0 %v228
      %v233 = vpop.xlane.xlu0 %232
      %234 = vadd.xlane.f32.xlu0 %v229
      %v235 = vpop.xlane.xlu0 %234
      %236 = vadd.xlane.f32.xlu0 %v230
      %v237 = vpop.xlane.xlu0 %236
      %238 = vadd.xlane.f32.xlu0 %v231
      %v239 = vpop.xlane.xlu0 %238
      %v240 = vmul.f32 %v233, %v219
      %v241 = vmul.f32 %v235, %v219
      %v242 = vmul.f32 %v237, %v219
      %v243 = vmul.f32 %v239, %v219
      %v244 = vadd.f32 %v240, 1e-12
      %v245 = vadd.f32 %v241, 1e-12
      %v246 = vadd.f32 %v242, 1e-12
      %v247 = vadd.f32 %v243, 1e-12
      %v248 = vrsqrt.pop %v244
      %v249 = vrsqrt.pop %v245
      %v250 = vrsqrt.pop %v246
      %v251 = vrsqrt.pop %v247
      %v252 = vmul.f32 %v224, %v248
      %v253 = vmul.f32 %v225, %v249
      %v254 = vmul.f32 %v226, %v250
      %v255 = vmul.f32 %v227, %v251
      %v256 = vlaneseq
      %v257 = vshrl.u32 %v256, 7
      %v258 = vsub.s32 1, %v257
      %v259 = vrot.slane %v67, %v258
      %v260 = vmul.f32 %v259, %v252
      %v261 = vmul.f32 %v259, %v253
      %v262 = vmul.f32 %v259, %v254
      %v263 = vmul.f32 %v259, %v255
      %v264 = vlaneseq
      %v265 = vshrl.u32 %v264, 7
      %v266 = vsub.s32 2, %v265
      %v267 = vrot.slane %v67, %v266
      %v268 = vadd.f32 %v260, %v267
      %v269 = vadd.f32 %v261, %v267
      %v270 = vadd.f32 %v262, %v267
      %v271 = vadd.f32 %v263, %v267
      %272 = vst [vmem:[#allocation2] sm:$0xff] %v268
      %273 = vst [vmem:[#allocation2 + $0x8] sm:$0xff] %v269
      %274 = vst [vmem:[#allocation2 + $0x10] sm:$0xff] %v270
      %275 = vst [vmem:[#allocation2 + $0x18] sm:$0xff] %v271
    $region37: #{tpu_custom_call.1} parent=1 // pred_fallthru
      _
    %v276 = vld [vmem:[#allocation2] sm:$0xff]
    %v277 = vld [vmem:[#allocation2 + $0x8] sm:$0xff]
    %v278 = vld [vmem:[#allocation2 + $0x10] sm:$0xff]
    %v279 = vld [vmem:[#allocation2 + $0x18] sm:$0xff]
    %v280 = vpack.c.bf16 %v277, %v276
    %v281 = vpack.c.bf16 %v279, %v278
    %v282 = vld [vmem:[#allocation8] sm:$0xff]
    %v283 = vld [vmem:[#allocation8 + $0x8] sm:$0xff]
    %v284 = vld [vmem:[#allocation8 + $0x10] sm:$0xff]
    %v285 = vld [vmem:[#allocation8 + $0x18] sm:$0xff]
    %v286 = vld [vmem:[#allocation8 + $0x20] sm:$0xff]
    %v287 = vld [vmem:[#allocation8 + $0x28] sm:$0xff]
    %v288 = vld [vmem:[#allocation8 + $0x30] sm:$0xff]
    %v289 = vld [vmem:[#allocation8 + $0x38] sm:$0xff]
    %v290 = vld [vmem:[#allocation8 + $0x40] sm:$0xff]
    %v291 = vld [vmem:[#allocation8 + $0x48] sm:$0xff]
    %v292 = vld [vmem:[#allocation8 + $0x50] sm:$0xff]
    %v293 = vld [vmem:[#allocation8 + $0x58] sm:$0xff]
    %v294 = vld [vmem:[#allocation8 + $0x60] sm:$0xff]
    %v295 = vld [vmem:[#allocation8 + $0x68] sm:$0xff]
    %v296 = vld [vmem:[#allocation8 + $0x70] sm:$0xff]
    %v297 = vld [vmem:[#allocation8 + $0x78] sm:$0xff]
    %v298 = vld [vmem:[#allocation8 + $0x80] sm:$0xff]
    %v299 = vld [vmem:[#allocation8 + $0x88] sm:$0xff]
    %v300 = vld [vmem:[#allocation8 + $0x90] sm:$0xff]
    %v301 = vld [vmem:[#allocation8 + $0x98] sm:$0xff]
    %v302 = vld [vmem:[#allocation8 + $0xa0] sm:$0xff]
    %v303 = vld [vmem:[#allocation8 + $0xa8] sm:$0xff]
    %v304 = vld [vmem:[#allocation8 + $0xb0] sm:$0xff]
    %v305 = vld [vmem:[#allocation8 + $0xb8] sm:$0xff]
    %v306 = vld [vmem:[#allocation8 + $0xc0] sm:$0xff]
    %v307 = vld [vmem:[#allocation8 + $0xc8] sm:$0xff]
    %v308 = vld [vmem:[#allocation8 + $0xd0] sm:$0xff]
    %v309 = vld [vmem:[#allocation8 + $0xd8] sm:$0xff]
    %v310 = vld [vmem:[#allocation8 + $0xe0] sm:$0xff]
    %v311 = vld [vmem:[#allocation8 + $0xe8] sm:$0xff]
    %v312 = vld [vmem:[#allocation8 + $0xf0] sm:$0xff]
    %v313 = vld [vmem:[#allocation8 + $0xf8] sm:$0xff]
    %v314 = vld [vmem:[%s4] sm:$0xf]
    %v316 = vlaneseq
    %v317 = vshrl.u32 %v316, 7
    %v318 = vsub.s32 0, %v317
    %v319 = vrot.slane %v314, %v318
    %v320 = vlaneseq
    %v321 = vshrl.u32 %v320, 7
    %v322 = vsub.s32 1, %v321
    %v323 = vrot.slane %v314, %v322
    %v324 = vlaneseq
    %v325 = vshrl.u32 %v324, 7
    %v326 = vsub.s32 2, %v325
    %v327 = vrot.slane %v314, %v326
    %v328 = vlaneseq
    %v329 = vshrl.u32 %v328, 7
    %v330 = vsub.s32 3, %v329
    %v331 = vrot.slane %v314, %v330
    %v368 = vunpack.c.l.b16 %v282
    %v369 = vunpack.c.h.b16 %v282
    %v370 = vunpack.c.l.b16 %v283
    %v371 = vunpack.c.h.b16 %v283
    %v372 = vunpack.c.l.b16 %v284
    %v373 = vunpack.c.h.b16 %v284
    %v374 = vunpack.c.l.b16 %v285
    %v375 = vunpack.c.h.b16 %v285
    %v376 = vunpack.c.l.b16 %v286
    %v377 = vunpack.c.h.b16 %v286
    %v378 = vunpack.c.l.b16 %v287
    %v379 = vunpack.c.h.b16 %v287
    %v380 = vunpack.c.l.b16 %v288
    %v381 = vunpack.c.h.b16 %v288
    %v382 = vunpack.c.l.b16 %v289
    %v383 = vunpack.c.h.b16 %v289
    %v384 = vunpack.c.l.b16 %v290
    %v385 = vunpack.c.h.b16 %v290
    %v386 = vunpack.c.l.b16 %v291
    %v387 = vunpack.c.h.b16 %v291
    %v388 = vunpack.c.l.b16 %v292
    %v389 = vunpack.c.h.b16 %v292
    %v390 = vunpack.c.l.b16 %v293
    %v391 = vunpack.c.h.b16 %v293
    %v392 = vunpack.c.l.b16 %v294
    %v393 = vunpack.c.h.b16 %v294
    %v394 = vunpack.c.l.b16 %v295
    %v395 = vunpack.c.h.b16 %v295
    %v396 = vunpack.c.l.b16 %v296
    %v397 = vunpack.c.h.b16 %v296
    %v398 = vunpack.c.l.b16 %v297
    %v399 = vunpack.c.h.b16 %v297
    %v400 = vunpack.c.l.b16 %v298
    %v401 = vunpack.c.h.b16 %v298
    %v402 = vunpack.c.l.b16 %v299
    %v403 = vunpack.c.h.b16 %v299
    %v404 = vunpack.c.l.b16 %v300
    %v405 = vunpack.c.h.b16 %v300
    %v406 = vunpack.c.l.b16 %v301
    %v407 = vunpack.c.h.b16 %v301
    %v408 = vunpack.c.l.b16 %v302
    %v409 = vunpack.c.h.b16 %v302
    %v410 = vunpack.c.l.b16 %v303
    %v411 = vunpack.c.h.b16 %v303
    %v412 = vunpack.c.l.b16 %v304
    %v413 = vunpack.c.h.b16 %v304
    %v414 = vunpack.c.l.b16 %v305
    %v415 = vunpack.c.h.b16 %v305
    %v416 = vunpack.c.l.b16 %v306
    %v417 = vunpack.c.h.b16 %v306
    %v418 = vunpack.c.l.b16 %v307
    %v419 = vunpack.c.h.b16 %v307
    %v420 = vunpack.c.l.b16 %v308
    %v421 = vunpack.c.h.b16 %v308
    %v422 = vunpack.c.l.b16 %v309
    %v423 = vunpack.c.h.b16 %v309
    %v424 = vunpack.c.l.b16 %v310
    %v425 = vunpack.c.h.b16 %v310
    %v426 = vunpack.c.l.b16 %v311
    %v427 = vunpack.c.h.b16 %v311
    %v428 = vunpack.c.l.b16 %v312
    %v429 = vunpack.c.h.b16 %v312
    %v430 = vunpack.c.l.b16 %v313
    %v431 = vunpack.c.h.b16 %v313
    %v432 = vpack.c.b16 %v372, %v368
    %v433 = vpack.c.b16 %v373, %v369
    %v434 = vpack.c.b16 %v374, %v370
    %v435 = vpack.c.b16 %v375, %v371
    %v436 = vpack.c.b16 %v380, %v376
    %v437 = vpack.c.b16 %v381, %v377
    %v438 = vpack.c.b16 %v382, %v378
    %v439 = vpack.c.b16 %v383, %v379
    %v440 = vpack.c.b16 %v388, %v384
    %v441 = vpack.c.b16 %v389, %v385
    %v442 = vpack.c.b16 %v390, %v386
    %v443 = vpack.c.b16 %v391, %v387
    %v444 = vpack.c.b16 %v396, %v392
    %v445 = vpack.c.b16 %v397, %v393
    %v446 = vpack.c.b16 %v398, %v394
    %v447 = vpack.c.b16 %v399, %v395
    %v448 = vpack.c.b16 %v404, %v400
    %v449 = vpack.c.b16 %v405, %v401
    %v450 = vpack.c.b16 %v406, %v402
    %v451 = vpack.c.b16 %v407, %v403
    %v452 = vpack.c.b16 %v412, %v408
    %v453 = vpack.c.b16 %v413, %v409
    %v454 = vpack.c.b16 %v414, %v410
    %v455 = vpack.c.b16 %v415, %v411
    %v456 = vpack.c.b16 %v420, %v416
    %v457 = vpack.c.b16 %v421, %v417
    %v458 = vpack.c.b16 %v422, %v418
    %v459 = vpack.c.b16 %v423, %v419
    %v460 = vpack.c.b16 %v428, %v424
    %v461 = vpack.c.b16 %v429, %v425
    %v462 = vpack.c.b16 %v430, %v426
    %v463 = vpack.c.b16 %v431, %v427
    %496 = vmatprep.subr.bf16.mxu0 %v433
    %497 = vmatpush1.bf16.msra.mxu0 %v432
    %498 = vmatprep.subr.bf16.mxu0 %v437
    %499 = vmatpush1.bf16.msra.mxu0 %v436
    %500 = vmatprep.subr.bf16.mxu0 %v441
    %501 = vmatpush1.bf16.msra.mxu0 %v440
    %502 = vmatprep.subr.bf16.mxu0 %v445
    %503 = vmatpush1.bf16.msra.mxu0 %v444
    %504 = vmatprep.subr.bf16.mxu0 %v449
    %505 = vmatpush1.bf16.msra.mxu0 %v448
    %506 = vmatprep.subr.bf16.mxu0 %v453
    %507 = vmatpush1.bf16.msra.mxu0 %v452
    %508 = vmatprep.subr.bf16.mxu0 %v457
    %509 = vmatpush1.bf16.msra.mxu0 %v456
    %510 = vmatprep.subr.bf16.mxu0 %v461
    %511 = vmatpush1.bf16.msra.mxu0 %v460
    %512 = vmatprep.subr.bf16.mxu0 0
    %513 = vmatpush1.bf16.msra.mxu0 0
    %514 = vmatprep.subr.bf16.mxu0 0
    %515 = vmatpush1.bf16.msra.mxu0 0
    %516 = vmatprep.subr.bf16.mxu0 0
    %517 = vmatpush1.bf16.msra.mxu0 0
    %518 = vmatprep.subr.bf16.mxu0 0
    %519 = vmatpush1.bf16.msra.mxu0 0
    %520 = vmatprep.subr.bf16.mxu0 0
    %521 = vmatpush1.bf16.msra.mxu0 0
    %522 = vmatprep.subr.bf16.mxu0 0
    %523 = vmatpush1.bf16.msra.mxu0 0
    %524 = vmatprep.subr.bf16.mxu0 0
    %525 = vmatpush1.bf16.msra.mxu0 0
    %526 = vmatprep.subr.bf16.mxu0 0
    %527 = vmatpush1.bf16.msra.mxu0 0
    %528 = vmatprep.mubr.bf16.mxu0 0
    %529 = vmatmul.mubr.bf16.gmra.mrb[0].mxu0 %v280
    %v530 = vpop.f32.mrb[0].mxu0
    %v531 = vadd.f32 %v319, %v530
    %v532 = vpop.f32.mrb[0].mxu0
    %v533 = vadd.f32 %v323, %v532
    %v534 = vpop.f32.mrb[0].mxu0
    %v535 = vadd.f32 %v319, %v534
    %v536 = vpop.f32.mrb[0].mxu0
    %v537 = vadd.f32 %v323, %v536
    %538 = vmatprep.mubr.bf16.mxu0 0
    %539 = vmatmul.mubr.bf16.gmra.mrb[0].mxu0 %v281
    %v540 = vpop.f32.mrb[0].mxu0
    %v541 = vadd.f32 %v319, %v540
    %v542 = vpop.f32.mrb[0].mxu0
    %v543 = vadd.f32 %v323, %v542
    %v544 = vpop.f32.mrb[0].mxu0
    %v545 = vadd.f32 %v319, %v544
    %v546 = vpop.f32.mrb[0].mxu0
    %v547 = vadd.f32 %v323, %v546
    %548 = vdwg.mxu0
    %549 = vmatprep.subr.bf16.mxu0 %v435
    %550 = vmatpush1.bf16.msra.mxu0 %v434
    %551 = vmatprep.subr.bf16.mxu0 %v439
    %552 = vmatpush1.bf16.msra.mxu0 %v438
    %553 = vmatprep.subr.bf16.mxu0 %v443
    %554 = vmatpush1.bf16.msra.mxu0 %v442
    %555 = vmatprep.subr.bf16.mxu0 %v447
    %556 = vmatpush1.bf16.msra.mxu0 %v446
    %557 = vmatprep.subr.bf16.mxu0 %v451
    %558 = vmatpush1.bf16.msra.mxu0 %v450
    %559 = vmatprep.subr.bf16.mxu0 %v455
    %560 = vmatpush1.bf16.msra.mxu0 %v454
    %561 = vmatprep.subr.bf16.mxu0 %v459
    %562 = vmatpush1.bf16.msra.mxu0 %v458
    %563 = vmatprep.subr.bf16.mxu0 %v463
    %564 = vmatpush1.bf16.msra.mxu0 %v462
    %565 = vmatprep.subr.bf16.mxu0 0
    %566 = vmatpush1.bf16.msra.mxu0 0
    %567 = vmatprep.subr.bf16.mxu0 0
    %568 = vmatpush1.bf16.msra.mxu0 0
    %569 = vmatprep.subr.bf16.mxu0 0
    %570 = vmatpush1.bf16.msra.mxu0 0
    %571 = vmatprep.subr.bf16.mxu0 0
    %572 = vmatpush1.bf16.msra.mxu0 0
    %573 = vmatprep.subr.bf16.mxu0 0
    %574 = vmatpush1.bf16.msra.mxu0 0
    %575 = vmatprep.subr.bf16.mxu0 0
    %576 = vmatpush1.bf16.msra.mxu0 0
    %577 = vmatprep.subr.bf16.mxu0 0
    %578 = vmatpush1.bf16.msra.mxu0 0
    %579 = vmatprep.subr.bf16.mxu0 0
    %580 = vmatpush1.bf16.msra.mxu0 0
    %581 = vmatprep.mubr.bf16.mxu0 0
    %582 = vmatmul.mubr.bf16.gmra.mrb[0].mxu0 %v280
    %v583 = vpop.f32.mrb[0].mxu0
    %v584 = vadd.f32 %v327, %v583
    %v585 = vpop.f32.mrb[0].mxu0
    %v586 = vadd.f32 %v331, %v585
    %v587 = vpop.f32.mrb[0].mxu0
    %v588 = vadd.f32 %v327, %v587
    %v589 = vpop.f32.mrb[0].mxu0
    %v590 = vadd.f32 %v331, %v589
    %591 = vmatprep.mubr.bf16.mxu0 0
    %592 = vmatmul.mubr.bf16.gmra.mrb[0].mxu0 %v281
    %v593 = vpop.f32.mrb[0].mxu0
    %v594 = vadd.f32 %v327, %v593
    %v595 = vpop.f32.mrb[0].mxu0
    %v596 = vadd.f32 %v331, %v595
    %v597 = vpop.f32.mrb[0].mxu0
    %v598 = vadd.f32 %v327, %v597
    %v599 = vpop.f32.mrb[0].mxu0
    %v600 = vadd.f32 %v331, %v599
    %601 = vdwg.mxu0
    %602 = vst [vmem:[#allocation9] sm:$0xff] %v531
    %603 = vst [vmem:[#allocation9 + $0x8] sm:$0xff] %v533
    %604 = vst [vmem:[#allocation9 + $0x10] sm:$0xff] %v584
    %605 = vst [vmem:[#allocation9 + $0x18] sm:$0xff] %v586
    %606 = vst [vmem:[#allocation9 + $0x20] sm:$0xff] %v535
    %607 = vst [vmem:[#allocation9 + $0x28] sm:$0xff] %v537
    %608 = vst [vmem:[#allocation9 + $0x30] sm:$0xff] %v588
    %609 = vst [vmem:[#allocation9 + $0x38] sm:$0xff] %v590
    %610 = vst [vmem:[#allocation9 + $0x40] sm:$0xff] %v541
    %611 = vst [vmem:[#allocation9 + $0x48] sm:$0xff] %v543
    %612 = vst [vmem:[#allocation9 + $0x50] sm:$0xff] %v594
    %613 = vst [vmem:[#allocation9 + $0x58] sm:$0xff] %v596
    %614 = vst [vmem:[#allocation9 + $0x60] sm:$0xff] %v545
    %615 = vst [vmem:[#allocation9 + $0x68] sm:$0xff] %v547
    %616 = vst [vmem:[#allocation9 + $0x70] sm:$0xff] %v598
    %617 = vst [vmem:[#allocation9 + $0x78] sm:$0xff] %v600
    // Predicated region
    $region38: #{tpu_custom_call.1} parent=1 // pred_check
      _
    $region39: #{tpu_custom_call.1} parent=1 // pred_check_branch
      %619 = sbr.rel (0) target = $region41
    $region40: #{tpu_custom_call.1} parent=1 // pred_region
      %s621 = ssub.s32 2048, 2048
      %622 = vsyncadd [#allocation5], %s621
      %s623 = sshll.u32 [#allocation9], 4
      %s624 = int_to_ptr.vmem [resolvable:$true] %s623
      %629 = dma.vmem_to_hbm [thread:$0]  %s624, 2048, %s5, [#allocation5], 512, 512, 32
    $region41: #{tpu_custom_call.1} parent=1 // pred_fallthru
      _
    // Predicated region
    $region42: #{tpu_custom_call.1} parent=1 // pred_check
      _
    $region43: #{tpu_custom_call.1} parent=1 // pred_check_branch
      %631 = sbr.rel (0) target = $region45
    $region44: #{tpu_custom_call.1} parent=1 // pred_region
      %632 = dma.done [#allocation5], 2048
    $region45: #{tpu_custom_call.1} parent=1 // pred_fallthru
      _
    %633 = vsyncpa [#allocation4], 1
    %634 = vsyncpa [#allocation7], 1
    %635 = vsyncpa [#allocation5], 1

</llo_original>
